<compile_context>
chip_gen: v7x
topology: tpu7x:2x2x1
jax: 0.10.0
libtpu: 0.0.40
codegen_flags: <defaults>
</compile_context>

<pallas_src>
import jax
import jax.numpy as jnp
from jax.experimental import pallas as pl
from jax.experimental.pallas import tpu as pltpu

NEURONS_L1_TO_L2 = 12     # hidden layer size
NEURONS_L2_TO_LATENT = 8  # latent size


def _round_up(x, m):
    return (x + m - 1) // m * m


# ----------------------------------------------------------------------------- kernels
def _ae_kernel_row_major(x_ref,
                         w1_ref, b1_ref, w2_ref, b2_ref,
                         w3_ref, b3_ref, w4_ref, b4_ref,
                         o_ref):
    """One (batch_tile, num_inputs) tile; weights pre-transposed to (in, out)."""
    x = x_ref[...]
    h = jnp.maximum(jnp.dot(x, w1_ref[...], preferred_element_type=jnp.float32) + b1_ref[...], 0.0)
    z = jnp.tanh(jnp.dot(h, w2_ref[...], preferred_element_type=jnp.float32) + b2_ref[...])
    h = jnp.maximum(jnp.dot(z, w3_ref[...], preferred_element_type=jnp.float32) + b3_ref[...], 0.0)
    y = jnp.tanh(jnp.dot(h, w4_ref[...], preferred_element_type=jnp.float32) + b4_ref[...])
    o_ref[...] = y.astype(o_ref.dtype)


def _ae_kernel_feature_major(xT_ref,
                             w1_ref, b1_ref, w2_ref, b2_ref,
                             w3_ref, b3_ref, w4_ref, b4_ref,
                             o_ref):
    """One (num_inputs, batch_tile) tile with batch on the 128-lane axis.

    Weights are in torch layout (out, in) and biases (out, 1), so
    y^T = tanh(W4·relu(W3·tanh(W2·relu(W1·x^T + b1) + b2) + b3) + b4).
    """
    xT = xT_ref[...]
    h = jnp.maximum(jnp.dot(w1_ref[...], xT, preferred_element_type=jnp.float32) + b1_ref[...], 0.0)
    z = jnp.tanh(jnp.dot(w2_ref[...], h, preferred_element_type=jnp.float32) + b2_ref[...])
    h = jnp.maximum(jnp.dot(w3_ref[...], z, preferred_element_type=jnp.float32) + b3_ref[...], 0.0)
    y = jnp.tanh(jnp.dot(w4_ref[...], h, preferred_element_type=jnp.float32) + b4_ref[...])
    o_ref[...] = y.astype(o_ref.dtype)


# ----------------------------------------------------------------------------- helpers
def _pick_batch_tile(batch, *, align, max_tile, min_steps=2):
    """Largest aligned tile <= max_tile that still yields >= min_steps grid steps.

    For tiny batches the full extent is used (a full-extent block is always legal).
    """
    if batch < min_steps * align:
        return batch
    tile = (batch // min_steps) // align * align
    return max(align, min(max_tile, tile))


def _vmem_limit_bytes(batch_tile, num_inputs, itemsize, feature_major):
    """VMEM budget: double-buffered in/out tiles + resident weights + headroom."""
    if feature_major:
        act = _round_up(num_inputs, 8) * _round_up(batch_tile, 128) * itemsize
        hid = _round_up(NEURONS_L1_TO_L2, 8) * _round_up(batch_tile, 128) * 4 * 3
    else:
        act = _round_up(batch_tile, 8) * _round_up(num_inputs, 128) * itemsize
        hid = _round_up(batch_tile, 8) * 128 * 4 * 3
    weights = 4 * (2 * (num_inputs * NEURONS_L1_TO_L2
                        + NEURONS_L1_TO_L2 * NEURONS_L2_TO_LATENT)
                   + 2 * num_inputs + 2 * (NEURONS_L1_TO_L2 + NEURONS_L2_TO_LATENT))
    need = 4 * act + hid + 2 * weights + (4 << 20)
    # Never below the default scoped limit; cap at the largest physical VMEM.
    return int(min(max(need, 32 << 20), 128 << 20))


def _cost_estimate(batch, num_inputs, itemsize):
    flops = 2 * batch * (2 * num_inputs * NEURONS_L1_TO_L2
                         + 2 * NEURONS_L1_TO_L2 * NEURONS_L2_TO_LATENT)
    transcendentals = batch * (NEURONS_L2_TO_LATENT + num_inputs)  # two tanh layers
    param_count = (num_inputs * NEURONS_L1_TO_L2 + NEURONS_L1_TO_L2
                   + NEURONS_L1_TO_L2 * NEURONS_L2_TO_LATENT + NEURONS_L2_TO_LATENT
                   + NEURONS_L2_TO_LATENT * NEURONS_L1_TO_L2 + NEURONS_L1_TO_L2
                   + NEURONS_L1_TO_L2 * num_inputs + num_inputs)
    bytes_accessed = 2 * batch * num_inputs * itemsize + param_count * 4
    return pl.CostEstimate(flops=int(flops),
                           transcendentals=int(transcendentals),
                           bytes_accessed=int(bytes_accessed))


def _resident(a):
    # Constant block index across the grid -> fetched once, stays VMEM-resident.
    return pl.BlockSpec(a.shape, lambda i: (0, 0))


# ----------------------------------------------------------------------------- wrappers
def simple_autoencoder_forward(x, params, *, batch_tile=None):
    """Row-major forward pass. x: (B, num_inputs) -> (B, num_inputs).

    params: w1..w4 stored as (in_features, out_features), b1..b4 as (1, out_features),
    i.e. torch Linear with weight pre-transposed (y = x @ W + b).
    """
    B, num_inputs = x.shape
    itemsize = jnp.dtype(x.dtype).itemsize
    if batch_tile is None:
        batch_tile = _pick_batch_tile(B, align=8, max_tile=4096)
    if batch_tile != B and batch_tile % 8 != 0:
        raise ValueError("batch_tile must equal the batch size or be a multiple of 8")
    grid = (pl.cdiv(B, batch_tile),)

    w1, b1 = params["w1"], params["b1"]
    w2, b2 = params["w2"], params["b2"]
    w3, b3 = params["w3"], params["b3"]
    w4, b4 = params["w4"], params["b4"]

    return pl.pallas_call(
        _ae_kernel_row_major,
        out_shape=jax.ShapeDtypeStruct((B, num_inputs), x.dtype),
        grid_spec=pltpu.PrefetchScalarGridSpec(
            num_scalar_prefetch=0,
            grid=grid,
            in_specs=[
                pl.BlockSpec((batch_tile, num_inputs), lambda i: (i, 0)),
                _resident(w1), _resident(b1),
                _resident(w2), _resident(b2),
                _resident(w3), _resident(b3),
                _resident(w4), _resident(b4),
            ],
            out_specs=pl.BlockSpec((batch_tile, num_inputs), lambda i: (i, 0)),
        ),
        compiler_params=pltpu.CompilerParams(
            dimension_semantics=("parallel",),
            vmem_limit_bytes=_vmem_limit_bytes(batch_tile, num_inputs, itemsize, False),
        ),
        cost_estimate=_cost_estimate(B, num_inputs, itemsize),
    )(x, w1, b1, w2, b2, w3, b3, w4, b4)


def simple_autoencoder_forward_feature_major(xT, params, *, batch_tile=None):
    """Lane-dense forward pass. xT: (num_inputs, B) -> (num_inputs, B).

    Prefer this path when the producer can emit the transposed activation layout;
    the batch then sits on the 128-lane axis (no lane-padding waste, unmasked stores).
    """
    num_inputs, B = xT.shape
    itemsize = jnp.dtype(xT.dtype).itemsize
    if batch_tile is None:
        batch_tile = _pick_batch_tile(B, align=128, max_tile=8192)
    if batch_tile != B and batch_tile % 128 != 0:
        raise ValueError("batch_tile must equal the batch size or be a multiple of 128")
    grid = (pl.cdiv(B, batch_tile),)

    # Torch layout for the transposed compute: W (out, in), b (out, 1).
    # Weights/biases are tiny; these transposes fold into the surrounding XLA graph.
    w1, b1 = params["w1"].T, params["b1"].T
    w2, b2 = params["w2"].T, params["b2"].T
    w3, b3 = params["w3"].T, params["b3"].T
    w4, b4 = params["w4"].T, params["b4"].T

    return pl.pallas_call(
        _ae_kernel_feature_major,
        out_shape=jax.ShapeDtypeStruct((num_inputs, B), xT.dtype),
        grid_spec=pltpu.PrefetchScalarGridSpec(
            num_scalar_prefetch=0,
            grid=grid,
            in_specs=[
                pl.BlockSpec((num_inputs, batch_tile), lambda i: (0, i)),
                _resident(w1), _resident(b1),
                _resident(w2), _resident(b2),
                _resident(w3), _resident(b3),
                _resident(w4), _resident(b4),
            ],
            out_specs=pl.BlockSpec((num_inputs, batch_tile), lambda i: (0, i)),
        ),
        compiler_params=pltpu.CompilerParams(
            dimension_semantics=("parallel",),
            vmem_limit_bytes=_vmem_limit_bytes(batch_tile, num_inputs, itemsize, True),
        ),
        cost_estimate=_cost_estimate(B, num_inputs, itemsize),
    )(xT, w1, b1, w2, b2, w3, b3, w4, b4)


# ----------------------------------------------------------------------------- params / reference
def init_params(key, num_inputs):
    """torch.nn.Linear-style init (U[-1/sqrt(fan_in), 1/sqrt(fan_in)]).

    Weights stored transposed as (in_features, out_features); biases as (1, out_features).
    """
    dims = [
        (num_inputs, NEURONS_L1_TO_L2),            # encoder Linear 1
        (NEURONS_L1_TO_L2, NEURONS_L2_TO_LATENT),  # encoder Linear 2
        (NEURONS_L2_TO_LATENT, NEURONS_L1_TO_L2),  # decoder Linear 1
        (NEURONS_L1_TO_L2, num_inputs),            # decoder Linear 2
    ]
    params = {}
    for idx, (fan_in, fan_out) in enumerate(dims, start=1):
        key, kw, kb = jax.random.split(key, 3)
        bound = 1.0 / jnp.sqrt(jnp.float32(fan_in))
        params[f"w{idx}"] = jax.random.uniform(kw, (fan_in, fan_out), jnp.float32, -bound, bound)
        params[f"b{idx}"] = jax.random.uniform(kb, (1, fan_out), jnp.float32, -bound, bound)
    return params


def reference_forward(x, params):
    """Plain-JAX reference for validation."""
    h = jnp.maximum(x @ params["w1"] + params["b1"], 0.0)
    z = jnp.tanh(h @ params["w2"] + params["b2"])
    h = jnp.maximum(z @ params["w3"] + params["b3"], 0.0)
    return jnp.tanh(h @ params["w4"] + params["b4"])


# TODO(synk): calc_reconstruction_error / predict_binary are host-side scalar loss &
# thresholding on top of forward(); they are not kernelized here.

if __name__ == "__main__":
    key = jax.random.PRNGKey(0)
    num_inputs = 16
    batch = 256  # small, but large enough that the default tile gives a multi-step grid

    kx, kp, kx2 = jax.random.split(key, 3)
    x = jax.random.normal(kx, (batch, num_inputs), jnp.float32)
    params = init_params(kp, num_inputs)
    ref = reference_forward(x, params)

    # Row-major path (original (B, num_inputs) interface, now tiled & pipelined).
    out_rm = jax.block_until_ready(simple_autoencoder_forward(x, params))
    assert out_rm.shape == (batch, num_inputs)
    assert jnp.allclose(out_rm, ref, atol=1e-5, rtol=1e-5), "row-major mismatch vs reference"

    # Lane-dense feature-major path (batch on the 128-lane axis).
    out_fm = jax.block_until_ready(simple_autoencoder_forward_feature_major(x.T, params))
    assert out_fm.shape == (num_inputs, batch)
    assert jnp.allclose(out_fm.T, ref, atol=1e-5, rtol=1e-5), "feature-major mismatch vs reference"

    # Non-divisible batch exercises the partial last block (cdiv grid).
    x2 = jax.random.normal(kx2, (200, num_inputs), jnp.float32)
    out2 = jax.block_until_ready(simple_autoencoder_forward(x2, params, batch_tile=128))
    assert jnp.allclose(out2, reference_forward(x2, params), atol=1e-5, rtol=1e-5), \
        "partial-block mismatch vs reference"

    print("KERNEL_OK")
</pallas_src>

<mosaic_0001>
module attributes {stable_mosaic.version = 11 : i64} {
  func.func @_ae_kernel_row_major(%arg0: i32, %arg1: memref<128x16xf32, #tpu.memory_space<vmem>>, %arg2: memref<16x12xf32, #tpu.memory_space<vmem>>, %arg3: memref<1x12xf32, #tpu.memory_space<vmem>>, %arg4: memref<12x8xf32, #tpu.memory_space<vmem>>, %arg5: memref<1x8xf32, #tpu.memory_space<vmem>>, %arg6: memref<8x12xf32, #tpu.memory_space<vmem>>, %arg7: memref<1x12xf32, #tpu.memory_space<vmem>>, %arg8: memref<12x16xf32, #tpu.memory_space<vmem>>, %arg9: memref<1x16xf32, #tpu.memory_space<vmem>>, %arg10: memref<128x16xf32, #tpu.memory_space<vmem>>) attributes {dimension_semantics = [#tpu.dimension_semantics<parallel>], iteration_bounds = array<i64: 2>, scalar_prefetch = 0 : i64, scratch_operands = 0 : i64, tpu.core_type = #tpu.core_type<tc>, window_params = [{transform_indices = @transform_0, window_bounds = array<i64: 128, 16>}, {pipeline_mode = #tpu.pipeline_mode<synchronous>, transform_indices = @transform_1, window_bounds = array<i64: 16, 12>}, {pipeline_mode = #tpu.pipeline_mode<synchronous>, transform_indices = @transform_2, window_bounds = array<i64: 1, 12>}, {pipeline_mode = #tpu.pipeline_mode<synchronous>, transform_indices = @transform_3, window_bounds = array<i64: 12, 8>}, {pipeline_mode = #tpu.pipeline_mode<synchronous>, transform_indices = @transform_4, window_bounds = array<i64: 1, 8>}, {pipeline_mode = #tpu.pipeline_mode<synchronous>, transform_indices = @transform_5, window_bounds = array<i64: 8, 12>}, {pipeline_mode = #tpu.pipeline_mode<synchronous>, transform_indices = @transform_6, window_bounds = array<i64: 1, 12>}, {pipeline_mode = #tpu.pipeline_mode<synchronous>, transform_indices = @transform_7, window_bounds = array<i64: 12, 16>}, {pipeline_mode = #tpu.pipeline_mode<synchronous>, transform_indices = @transform_8, window_bounds = array<i64: 1, 16>}, {transform_indices = @transform_9, window_bounds = array<i64: 128, 16>}]} {
    %c0 = arith.constant 0 : index
    %c0_0 = arith.constant 0 : index
    %0 = vector.load %arg1[%c0, %c0_0] : memref<128x16xf32, #tpu.memory_space<vmem>>, vector<128x16xf32>
    %c0_1 = arith.constant 0 : index
    %c0_2 = arith.constant 0 : index
    %1 = vector.load %arg2[%c0_1, %c0_2] : memref<16x12xf32, #tpu.memory_space<vmem>>, vector<16x12xf32>
    %cst = arith.constant dense<0.000000e+00> : vector<128x12xf32>
    %2 = tpu.matmul %0, %1, %cst {dimension_numbers = #tpu.dot_dimension_numbers<[1], [0], [0], [1], [0, 0, 1, 1], [], []>} : vector<128x16xf32>, vector<16x12xf32>, vector<128x12xf32> -> vector<128x12xf32>
    %c0_3 = arith.constant 0 : index
    %c0_4 = arith.constant 0 : index
    %3 = vector.load %arg3[%c0_3, %c0_4] : memref<1x12xf32, #tpu.memory_space<vmem>>, vector<1x12xf32>
    %4 = vector.broadcast %3 : vector<1x12xf32> to vector<128x12xf32>
    %5 = arith.addf %2, %4 : vector<128x12xf32>
    %cst_5 = arith.constant 0.000000e+00 : f32
    %6 = vector.broadcast %cst_5 : f32 to vector<128x12xf32>
    %7 = arith.maximumf %5, %6 : vector<128x12xf32>
    %c0_6 = arith.constant 0 : index
    %c0_7 = arith.constant 0 : index
    %8 = vector.load %arg4[%c0_6, %c0_7] : memref<12x8xf32, #tpu.memory_space<vmem>>, vector<12x8xf32>
    %cst_8 = arith.constant dense<0.000000e+00> : vector<128x8xf32>
    %9 = tpu.matmul %7, %8, %cst_8 {dimension_numbers = #tpu.dot_dimension_numbers<[1], [0], [0], [1], [0, 0, 1, 1], [], []>} : vector<128x12xf32>, vector<12x8xf32>, vector<128x8xf32> -> vector<128x8xf32>
    %c0_9 = arith.constant 0 : index
    %c0_10 = arith.constant 0 : index
    %10 = vector.load %arg5[%c0_9, %c0_10] : memref<1x8xf32, #tpu.memory_space<vmem>>, vector<1x8xf32>
    %11 = vector.broadcast %10 : vector<1x8xf32> to vector<128x8xf32>
    %12 = arith.addf %9, %11 : vector<128x8xf32>
    %13 = math.tanh %12 : vector<128x8xf32>
    %c0_11 = arith.constant 0 : index
    %c0_12 = arith.constant 0 : index
    %14 = vector.load %arg6[%c0_11, %c0_12] : memref<8x12xf32, #tpu.memory_space<vmem>>, vector<8x12xf32>
    %cst_13 = arith.constant dense<0.000000e+00> : vector<128x12xf32>
    %15 = tpu.matmul %13, %14, %cst_13 {dimension_numbers = #tpu.dot_dimension_numbers<[1], [0], [0], [1], [0, 0, 1, 1], [], []>} : vector<128x8xf32>, vector<8x12xf32>, vector<128x12xf32> -> vector<128x12xf32>
    %c0_14 = arith.constant 0 : index
    %c0_15 = arith.constant 0 : index
    %16 = vector.load %arg7[%c0_14, %c0_15] : memref<1x12xf32, #tpu.memory_space<vmem>>, vector<1x12xf32>
    %17 = vector.broadcast %16 : vector<1x12xf32> to vector<128x12xf32>
    %18 = arith.addf %15, %17 : vector<128x12xf32>
    %cst_16 = arith.constant 0.000000e+00 : f32
    %19 = vector.broadcast %cst_16 : f32 to vector<128x12xf32>
    %20 = arith.maximumf %18, %19 : vector<128x12xf32>
    %c0_17 = arith.constant 0 : index
    %c0_18 = arith.constant 0 : index
    %21 = vector.load %arg8[%c0_17, %c0_18] : memref<12x16xf32, #tpu.memory_space<vmem>>, vector<12x16xf32>
    %cst_19 = arith.constant dense<0.000000e+00> : vector<128x16xf32>
    %22 = tpu.matmul %20, %21, %cst_19 {dimension_numbers = #tpu.dot_dimension_numbers<[1], [0], [0], [1], [0, 0, 1, 1], [], []>} : vector<128x12xf32>, vector<12x16xf32>, vector<128x16xf32> -> vector<128x16xf32>
    %c0_20 = arith.constant 0 : index
    %c0_21 = arith.constant 0 : index
    %23 = vector.load %arg9[%c0_20, %c0_21] : memref<1x16xf32, #tpu.memory_space<vmem>>, vector<1x16xf32>
    %24 = vector.broadcast %23 : vector<1x16xf32> to vector<128x16xf32>
    %25 = arith.addf %22, %24 : vector<128x16xf32>
    %26 = math.tanh %25 : vector<128x16xf32>
    %c0_22 = arith.constant 0 : index
    %c0_23 = arith.constant 0 : index
    %27 = vector.load %arg10[%c0_22, %c0_23] : memref<128x16xf32, #tpu.memory_space<vmem>>, vector<128x16xf32>
    tpu.vector_store %arg10[%c0_22, %c0_23], %26 {strides = array<i32>} : memref<128x16xf32, #tpu.memory_space<vmem>>, vector<128x16xf32>,
    return
  }
  func.func @transform_0(%arg0: i32) -> (i32, i32) {
    %c0_i32 = arith.constant 0 : i32
    %c0_i32_0 = arith.constant 0 : i32
    return %arg0, %c0_i32 : i32, i32
  }
  func.func @transform_1(%arg0: i32) -> (i32, i32) {
    %c0_i32 = arith.constant 0 : i32
    %c0_i32_0 = arith.constant 0 : i32
    %c0_i32_1 = arith.constant 0 : i32
    return %c0_i32, %c0_i32_0 : i32, i32
  }
  func.func @transform_2(%arg0: i32) -> (i32, i32) {
    %c0_i32 = arith.constant 0 : i32
    %c0_i32_0 = arith.constant 0 : i32
    %c0_i32_1 = arith.constant 0 : i32
    return %c0_i32, %c0_i32_0 : i32, i32
  }
  func.func @transform_3(%arg0: i32) -> (i32, i32) {
    %c0_i32 = arith.constant 0 : i32
    %c0_i32_0 = arith.constant 0 : i32
    %c0_i32_1 = arith.constant 0 : i32
    return %c0_i32, %c0_i32_0 : i32, i32
  }
  func.func @transform_4(%arg0: i32) -> (i32, i32) {
    %c0_i32 = arith.constant 0 : i32
    %c0_i32_0 = arith.constant 0 : i32
    %c0_i32_1 = arith.constant 0 : i32
    return %c0_i32, %c0_i32_0 : i32, i32
  }
  func.func @transform_5(%arg0: i32) -> (i32, i32) {
    %c0_i32 = arith.constant 0 : i32
    %c0_i32_0 = arith.constant 0 : i32
    %c0_i32_1 = arith.constant 0 : i32
    return %c0_i32, %c0_i32_0 : i32, i32
  }
  func.func @transform_6(%arg0: i32) -> (i32, i32) {
    %c0_i32 = arith.constant 0 : i32
    %c0_i32_0 = arith.constant 0 : i32
    %c0_i32_1 = arith.constant 0 : i32
    return %c0_i32, %c0_i32_0 : i32, i32
  }
  func.func @transform_7(%arg0: i32) -> (i32, i32) {
    %c0_i32 = arith.constant 0 : i32
    %c0_i32_0 = arith.constant 0 : i32
    %c0_i32_1 = arith.constant 0 : i32
    return %c0_i32, %c0_i32_0 : i32, i32
  }
  func.func @transform_8(%arg0: i32) -> (i32, i32) {
    %c0_i32 = arith.constant 0 : i32
    %c0_i32_0 = arith.constant 0 : i32
    %c0_i32_1 = arith.constant 0 : i32
    return %c0_i32, %c0_i32_0 : i32, i32
  }
  func.func @transform_9(%arg0: i32) -> (i32, i32) {
    %c0_i32 = arith.constant 0 : i32
    %c0_i32_0 = arith.constant 0 : i32
    return %arg0, %c0_i32 : i32, i32
  }
}

</mosaic_0001>

<llo_original>
// kernel: tpu_custom_call.1
$region0: #{tpu_custom_call.1}
  #allocation0 [shape = 'u32[]', space=smem, size = 0x4, offset = 0x4, fixed_abs, tag = 'smem constant byte address 0x4 - core index']
  #allocation1 [shape = 'u32[144,128]{1,0:T(1,128)}', space=vmem, size = 0x12000, scoped, tag = 'internal scratch']
  %s0 = inlined_call_operand.vmem [shape: f32[256,16], index: 0, kind: input, shape index: {}]
  %s1 = inlined_call_operand.vmem [shape: f32[16,12], index: 1, kind: input, shape index: {}]
  %s2 = inlined_call_operand.vmem [shape: f32[1,12], index: 2, kind: input, shape index: {}]
  %s3 = inlined_call_operand.vmem [shape: f32[12,8], index: 3, kind: input, shape index: {}]
  %s4 = inlined_call_operand.vmem [shape: f32[1,8], index: 4, kind: input, shape index: {}]
  %s5 = inlined_call_operand.vmem [shape: f32[8,12], index: 5, kind: input, shape index: {}]
  %s6 = inlined_call_operand.vmem [shape: f32[1,12], index: 6, kind: input, shape index: {}]
  %s7 = inlined_call_operand.vmem [shape: f32[12,16], index: 7, kind: input, shape index: {}]
  %s8 = inlined_call_operand.vmem [shape: f32[1,16], index: 8, kind: input, shape index: {}]
  %s9 = inlined_call_operand.vmem [shape: f32[256,16], index: 9, kind: output, shape index: {}]
  %s10 = sld [smem:[#allocation0]]
  $region69: #{tpu_custom_call.1} parent=0
    _
  %s12 = ssub.s32 1, %s10
  %s13 = scalar_select 0, %s12, %s10
  loop: start=0, step=1, limit=4
  $region2: #{tpu_custom_call.1} parent=0 // loop_pre_header
    _
  $region3: #{tpu_custom_call.1} parent=0 // loop_header
    %s15 = sphi 0, %s19
    %p16 = scmp.ge.s32.totalorder %s15, 4
    %s25 = sphi 0, %s27
    %s28 = sphi 0, %s25
    %s29 = sphi 0, %s28
    %s45 = sphi 0, %s29
    %s49 = sphi 0, %s49
    %s51 = sphi 0, %s49
    %s52 = sphi 0, %s51
    %s66 = sphi 0, %s52
    %s70 = sphi 0, %s70
    %s72 = sphi 0, %s70
    %s73 = sphi 0, %s72
    %s87 = sphi 0, %s73
    %s91 = sphi 0, %s91
    %s93 = sphi 0, %s91
    %s94 = sphi 0, %s93
    %s108 = sphi 0, %s94
    %s112 = sphi 0, %s112
    %s114 = sphi 0, %s112
    %s115 = sphi 0, %s114
    %s129 = sphi 0, %s115
    %s133 = sphi 0, %s133
    %s135 = sphi 0, %s133
    %s136 = sphi 0, %s135
    %s150 = sphi 0, %s136
    %s154 = sphi 0, %s154
    %s156 = sphi 0, %s154
    %s157 = sphi 0, %s156
    %s171 = sphi 0, %s157
    %s175 = sphi 0, %s175
    %s177 = sphi 0, %s175
    %s178 = sphi 0, %s177
    %s192 = sphi 0, %s178
    %s196 = sphi 0, %s196
    %s198 = sphi 0, %s196
    %s199 = sphi 0, %s198
    %s213 = sphi 0, %s199
    %s219 = sphi 0, %s221
    %s222 = sphi 0, %s219
    %s223 = sphi 0, %s222
    %s239 = sphi 0, %s223
  $region4: #{tpu_custom_call.1} parent=0 // loop_header_branch
    %18 = sbr.rel (%p16) target = $region8
  $region5: #{tpu_custom_call.1} parent=0 // loop_body
    %s20 = ssub.s32 %s15, 1
    %s21 = ssub.s32 %s15, 2
    %s22 = sadd.s32 %s15, 1
    %s23 = ssub.s32 %s15, %s22
    %p24 = scmp.eq.s32.totalorder %s23, 0
    %s26 = sadd.s32 %s25, 1
    %s27 = scalar_select %p24, %s25, %s26
    %p30 = pneg %p24
    %p31 = scmp.eq.s32.totalorder %s15, 1
    %p32 = por %p30, %p31
    %p33 = scmp.ne.s32.totalorder %s25, %s28
    %p34 = scmp.eq.s32.totalorder %s15, 0
    %p35 = por %p33, %p34
    %p36 = scmp.ne.s32.totalorder %s25, %s28
    %p37 = scmp.eq.s32.totalorder %s20, 1
    %p38 = por %p36, %p37
    %p39 = scmp.ne.s32.totalorder %s28, %s29
    %p40 = scmp.eq.s32.totalorder %s20, 0
    %p41 = por %p39, %p40
    %p42 = scmp.ne.s32.totalorder %s28, %s29
    %p43 = scmp.eq.s32.totalorder %s21, 1
    %p44 = por %p42, %p43
    %p46 = scmp.ne.s32.totalorder %s29, %s45
    %p47 = scmp.eq.s32.totalorder %s21, 0
    %p48 = por %p46, %p47
    %s50 = sadd.s32 %s49, 1
    %p53 = scmp.eq.s32.totalorder %s15, 1
    %p54 = scmp.ne.s32.totalorder %s49, %s51
    %p55 = scmp.eq.s32.totalorder %s15, 0
    %p56 = por %p54, %p55
    %p57 = scmp.ne.s32.totalorder %s49, %s51
    %p58 = scmp.eq.s32.totalorder %s20, 1
    %p59 = por %p57, %p58
    %p60 = scmp.ne.s32.totalorder %s51, %s52
    %p61 = scmp.eq.s32.totalorder %s20, 0
    %p62 = por %p60, %p61
    %p63 = scmp.ne.s32.totalorder %s51, %s52
    %p64 = scmp.eq.s32.totalorder %s21, 1
    %p65 = por %p63, %p64
    %p67 = scmp.ne.s32.totalorder %s52, %s66
    %p68 = scmp.eq.s32.totalorder %s21, 0
    %p69 = por %p67, %p68
    %s71 = sadd.s32 %s70, 1
    %p74 = scmp.eq.s32.totalorder %s15, 1
    %p75 = scmp.ne.s32.totalorder %s70, %s72
    %p76 = scmp.eq.s32.totalorder %s15, 0
    %p77 = por %p75, %p76
    %p78 = scmp.ne.s32.totalorder %s70, %s72
    %p79 = scmp.eq.s32.totalorder %s20, 1
    %p80 = por %p78, %p79
    %p81 = scmp.ne.s32.totalorder %s72, %s73
    %p82 = scmp.eq.s32.totalorder %s20, 0
    %p83 = por %p81, %p82
    %p84 = scmp.ne.s32.totalorder %s72, %s73
    %p85 = scmp.eq.s32.totalorder %s21, 1
    %p86 = por %p84, %p85
    %p88 = scmp.ne.s32.totalorder %s73, %s87
    %p89 = scmp.eq.s32.totalorder %s21, 0
    %p90 = por %p88, %p89
    %s92 = sadd.s32 %s91, 1
    %p95 = scmp.eq.s32.totalorder %s15, 1
    %p96 = scmp.ne.s32.totalorder %s91, %s93
    %p97 = scmp.eq.s32.totalorder %s15, 0
    %p98 = por %p96, %p97
    %p99 = scmp.ne.s32.totalorder %s91, %s93
    %p100 = scmp.eq.s32.totalorder %s20, 1
    %p101 = por %p99, %p100
    %p102 = scmp.ne.s32.totalorder %s93, %s94
    %p103 = scmp.eq.s32.totalorder %s20, 0
    %p104 = por %p102, %p103
    %p105 = scmp.ne.s32.totalorder %s93, %s94
    %p106 = scmp.eq.s32.totalorder %s21, 1
    %p107 = por %p105, %p106
    %p109 = scmp.ne.s32.totalorder %s94, %s108
    %p110 = scmp.eq.s32.totalorder %s21, 0
    %p111 = por %p109, %p110
    %s113 = sadd.s32 %s112, 1
    %p116 = scmp.eq.s32.totalorder %s15, 1
    %p117 = scmp.ne.s32.totalorder %s112, %s114
    %p118 = scmp.eq.s32.totalorder %s15, 0
    %p119 = por %p117, %p118
    %p120 = scmp.ne.s32.totalorder %s112, %s114
    %p121 = scmp.eq.s32.totalorder %s20, 1
    %p122 = por %p120, %p121
    %p123 = scmp.ne.s32.totalorder %s114, %s115
    %p124 = scmp.eq.s32.totalorder %s20, 0
    %p125 = por %p123, %p124
    %p126 = scmp.ne.s32.totalorder %s114, %s115
    %p127 = scmp.eq.s32.totalorder %s21, 1
    %p128 = por %p126, %p127
    %p130 = scmp.ne.s32.totalorder %s115, %s129
    %p131 = scmp.eq.s32.totalorder %s21, 0
    %p132 = por %p130, %p131
    %s134 = sadd.s32 %s133, 1
    %p137 = scmp.eq.s32.totalorder %s15, 1
    %p138 = scmp.ne.s32.totalorder %s133, %s135
    %p139 = scmp.eq.s32.totalorder %s15, 0
    %p140 = por %p138, %p139
    %p141 = scmp.ne.s32.totalorder %s133, %s135
    %p142 = scmp.eq.s32.totalorder %s20, 1
    %p143 = por %p141, %p142
    %p144 = scmp.ne.s32.totalorder %s135, %s136
    %p145 = scmp.eq.s32.totalorder %s20, 0
    %p146 = por %p144, %p145
    %p147 = scmp.ne.s32.totalorder %s135, %s136
    %p148 = scmp.eq.s32.totalorder %s21, 1
    %p149 = por %p147, %p148
    %p151 = scmp.ne.s32.totalorder %s136, %s150
    %p152 = scmp.eq.s32.totalorder %s21, 0
    %p153 = por %p151, %p152
    %s155 = sadd.s32 %s154, 1
    %p158 = scmp.eq.s32.totalorder %s15, 1
    %p159 = scmp.ne.s32.totalorder %s154, %s156
    %p160 = scmp.eq.s32.totalorder %s15, 0
    %p161 = por %p159, %p160
    %p162 = scmp.ne.s32.totalorder %s154, %s156
    %p163 = scmp.eq.s32.totalorder %s20, 1
    %p164 = por %p162, %p163
    %p165 = scmp.ne.s32.totalorder %s156, %s157
    %p166 = scmp.eq.s32.totalorder %s20, 0
    %p167 = por %p165, %p166
    %p168 = scmp.ne.s32.totalorder %s156, %s157
    %p169 = scmp.eq.s32.totalorder %s21, 1
    %p170 = por %p168, %p169
    %p172 = scmp.ne.s32.totalorder %s157, %s171
    %p173 = scmp.eq.s32.totalorder %s21, 0
    %p174 = por %p172, %p173
    %s176 = sadd.s32 %s175, 1
    %p179 = scmp.eq.s32.totalorder %s15, 1
    %p180 = scmp.ne.s32.totalorder %s175, %s177
    %p181 = scmp.eq.s32.totalorder %s15, 0
    %p182 = por %p180, %p181
    %p183 = scmp.ne.s32.totalorder %s175, %s177
    %p184 = scmp.eq.s32.totalorder %s20, 1
    %p185 = por %p183, %p184
    %p186 = scmp.ne.s32.totalorder %s177, %s178
    %p187 = scmp.eq.s32.totalorder %s20, 0
    %p188 = por %p186, %p187
    %p189 = scmp.ne.s32.totalorder %s177, %s178
    %p190 = scmp.eq.s32.totalorder %s21, 1
    %p191 = por %p189, %p190
    %p193 = scmp.ne.s32.totalorder %s178, %s192
    %p194 = scmp.eq.s32.totalorder %s21, 0
    %p195 = por %p193, %p194
    %s197 = sadd.s32 %s196, 1
    %p200 = scmp.eq.s32.totalorder %s15, 1
    %p201 = scmp.ne.s32.totalorder %s196, %s198
    %p202 = scmp.eq.s32.totalorder %s15, 0
    %p203 = por %p201, %p202
    %p204 = scmp.ne.s32.totalorder %s196, %s198
    %p205 = scmp.eq.s32.totalorder %s20, 1
    %p206 = por %p204, %p205
    %p207 = scmp.ne.s32.totalorder %s198, %s199
    %p208 = scmp.eq.s32.totalorder %s20, 0
    %p209 = por %p207, %p208
    %p210 = scmp.ne.s32.totalorder %s198, %s199
    %p211 = scmp.eq.s32.totalorder %s21, 1
    %p212 = por %p210, %p211
    %p214 = scmp.ne.s32.totalorder %s199, %s213
    %p215 = scmp.eq.s32.totalorder %s21, 0
    %p216 = por %p214, %p215
    %s217 = ssub.s32 %s15, %s22
    %p218 = scmp.eq.s32.totalorder %s217, 0
    %s220 = sadd.s32 %s219, 1
    %s221 = scalar_select %p218, %s219, %s220
    %p224 = pneg %p218
    %p225 = scmp.eq.s32.totalorder %s15, 1
    %p226 = por %p224, %p225
    %p227 = scmp.ne.s32.totalorder %s219, %s222
    %p228 = scmp.eq.s32.totalorder %s15, 0
    %p229 = por %p227, %p228
    %p230 = scmp.ne.s32.totalorder %s219, %s222
    %p231 = scmp.eq.s32.totalorder %s20, 1
    %p232 = por %p230, %p231
    %p233 = scmp.ne.s32.totalorder %s222, %s223
    %p234 = scmp.eq.s32.totalorder %s20, 0
    %p235 = por %p233, %p234
    %p236 = scmp.ne.s32.totalorder %s222, %s223
    %p237 = scmp.eq.s32.totalorder %s21, 1
    %p238 = por %p236, %p237
    %p240 = scmp.ne.s32.totalorder %s223, %s239
    %p241 = scmp.eq.s32.totalorder %s21, 0
    %p242 = por %p240, %p241
    %p243 = scmp.le.s32.totalorder 1, %s15
    %p244 = scmp.lt.s32.totalorder %s15, 3
    %p245 = pnand %p243, %p244
    %p246 = pneg %p245
    // Predicated region
    $region9: #{tpu_custom_call.1} parent=5 // pred_check
      _
    $region10: #{tpu_custom_call.1} parent=5 // pred_check_branch
      %248 = sbr.rel (%p245) target = $region12
    $region11: #{tpu_custom_call.1} parent=5 // pred_region
      %s249 = ssub.s32 %s15, 1
      // Predicated region
      $region13: #{tpu_custom_call.1} parent=11 // pred_check
        %p250 = pneg %p62
      $region14: #{tpu_custom_call.1} parent=11 // pred_check_branch
        %252 = sbr.rel (%p250) target = $region16
      $region15: #{tpu_custom_call.1} parent=11 // pred_region
        _
      $region16: #{tpu_custom_call.1} parent=11 // pred_fallthru
        _
      // Predicated region
      $region17: #{tpu_custom_call.1} parent=11 // pred_check
        %p253 = pneg %p83
      $region18: #{tpu_custom_call.1} parent=11 // pred_check_branch
        %255 = sbr.rel (%p253) target = $region20
      $region19: #{tpu_custom_call.1} parent=11 // pred_region
        _
      $region20: #{tpu_custom_call.1} parent=11 // pred_fallthru
        _
      // Predicated region
      $region21: #{tpu_custom_call.1} parent=11 // pred_check
        %p256 = pneg %p104
      $region22: #{tpu_custom_call.1} parent=11 // pred_check_branch
        %258 = sbr.rel (%p256) target = $region24
      $region23: #{tpu_custom_call.1} parent=11 // pred_region
        _
      $region24: #{tpu_custom_call.1} parent=11 // pred_fallthru
        _
      // Predicated region
      $region25: #{tpu_custom_call.1} parent=11 // pred_check
        %p259 = pneg %p125
      $region26: #{tpu_custom_call.1} parent=11 // pred_check_branch
        %261 = sbr.rel (%p259) target = $region28
      $region27: #{tpu_custom_call.1} parent=11 // pred_region
        _
      $region28: #{tpu_custom_call.1} parent=11 // pred_fallthru
        _
      // Predicated region
      $region29: #{tpu_custom_call.1} parent=11 // pred_check
        %p262 = pneg %p146
      $region30: #{tpu_custom_call.1} parent=11 // pred_check_branch
        %264 = sbr.rel (%p262) target = $region32
      $region31: #{tpu_custom_call.1} parent=11 // pred_region
        _
      $region32: #{tpu_custom_call.1} parent=11 // pred_fallthru
        _
      // Predicated region
      $region33: #{tpu_custom_call.1} parent=11 // pred_check
        %p265 = pneg %p167
      $region34: #{tpu_custom_call.1} parent=11 // pred_check_branch
        %267 = sbr.rel (%p265) target = $region36
      $region35: #{tpu_custom_call.1} parent=11 // pred_region
        _
      $region36: #{tpu_custom_call.1} parent=11 // pred_fallthru
        _
      // Predicated region
      $region37: #{tpu_custom_call.1} parent=11 // pred_check
        %p268 = pneg %p188
      $region38: #{tpu_custom_call.1} parent=11 // pred_check_branch
        %270 = sbr.rel (%p268) target = $region40
      $region39: #{tpu_custom_call.1} parent=11 // pred_region
        _
      $region40: #{tpu_custom_call.1} parent=11 // pred_fallthru
        _
      // Predicated region
      $region41: #{tpu_custom_call.1} parent=11 // pred_check
        %p271 = pneg %p209
      $region42: #{tpu_custom_call.1} parent=11 // pred_check_branch
        %273 = sbr.rel (%p271) target = $region44
      $region43: #{tpu_custom_call.1} parent=11 // pred_region
        _
      $region44: #{tpu_custom_call.1} parent=11 // pred_fallthru
        _
    $region12: #{tpu_custom_call.1} parent=5 // pred_fallthru
      _
    %p274 = scmp.lt.s32.totalorder %s15, 2
    // Predicated region
    $region45: #{tpu_custom_call.1} parent=5 // pred_check
      %p275 = pneg %p274
    $region46: #{tpu_custom_call.1} parent=5 // pred_check_branch
      %277 = sbr.rel (%p275) target = $region48
    $region47: #{tpu_custom_call.1} parent=5 // pred_region
      // Predicated region
      $region49: #{tpu_custom_call.1} parent=47 // pred_check
        %p278 = pneg %p35
      $region50: #{tpu_custom_call.1} parent=47 // pred_check_branch
        %280 = sbr.rel (%p278) target = $region52
      $region51: #{tpu_custom_call.1} parent=47 // pred_region
        %s281 = smul.u32 16, %s15
        %p282 = scmp.lt.s32.totalorder %s281, 31
        %s283 = scalar_select %p282, %s281, 31
        %s284 = smul.addr %s283, 8
        %s285 = scalar_lea.vmem %s0, %s284
        %s286 = smul.u32 16, %s15
      $region52: #{tpu_custom_call.1} parent=47 // pred_fallthru
        _
    $region48: #{tpu_custom_call.1} parent=5 // pred_fallthru
      _
    %p287 = scmp.le.s32.totalorder 1, %s15
    %p288 = scmp.lt.s32.totalorder %s15, 3
    %p289 = pnand %p287, %p288
    %p290 = pneg %p289
    // Predicated region
    $region53: #{tpu_custom_call.1} parent=5 // pred_check
      _
    $region54: #{tpu_custom_call.1} parent=5 // pred_check_branch
      %292 = sbr.rel (%p289) target = $region56
    $region55: #{tpu_custom_call.1} parent=5 // pred_region
      %s293 = ssub.s32 %s15, 1
      %s294 = smul.u32 16, %s20
      %p295 = scmp.lt.s32.totalorder %s294, 31
      %s296 = scalar_select %p295, %s294, 31
      %s297 = smul.addr %s296, 8
      %s298 = scalar_lea.vmem %s0, %s297
      %p299 = pneg %p41
      %p300 = pneg %p38
      %p301 = pneg %p62
      %p302 = pneg %p59
      %p303 = pneg %p83
      %p304 = pneg %p80
      %p305 = pneg %p104
      %p306 = pneg %p101
      %p307 = pneg %p125
      %p308 = pneg %p122
      %p309 = pneg %p146
      %p310 = pneg %p143
      %p311 = pneg %p167
      %p312 = pneg %p164
      %p313 = pneg %p188
      %p314 = pneg %p185
      %p315 = pneg %p209
      %p316 = pneg %p206
      %p317 = pneg %p235
      %p318 = pneg %p232
      %s319 = smul.u32 16, %s20
      %p320 = scmp.lt.s32.totalorder %s319, 31
      %s321 = scalar_select %p320, %s319, 31
      %s322 = smul.addr %s321, 8
      %s323 = scalar_lea.vmem %s9, %s322
      %s324 = smul.u32 16, %s20
      %p325 = scmp.lt.s32.totalorder %s324, 31
      %s326 = scalar_select %p325, %s324, 31
      %s327 = smul.addr %s326, 8
      %s328 = scalar_lea.vmem %s0, %s327
      %s329 = smul.u32 16, %s20
      %s330 = smul.u32 16, %s20
      %p331 = scmp.lt.s32.totalorder %s330, 31
      %s332 = scalar_select %p331, %s330, 31
      %s333 = smul.addr %s332, 8
      %s334 = scalar_lea.vmem %s9, %s333
      %s335 = smul.u32 16, %s20
      %v336 = vld [vmem:[%s328] sm:$0xff]
      %v337 = vld [vmem:[%s328 + $0x8] sm:$0xff]
      %v338 = vld [vmem:[%s328 + $0x10] sm:$0xff]
      %v339 = vld [vmem:[%s328 + $0x18] sm:$0xff]
      %v340 = vld [vmem:[%s328 + $0x20] sm:$0xff]
      %v341 = vld [vmem:[%s328 + $0x28] sm:$0xff]
      %v342 = vld [vmem:[%s328 + $0x30] sm:$0xff]
      %v343 = vld [vmem:[%s328 + $0x38] sm:$0xff]
      %v344 = vld [vmem:[%s328 + $0x40] sm:$0xff]
      %v345 = vld [vmem:[%s328 + $0x48] sm:$0xff]
      %v346 = vld [vmem:[%s328 + $0x50] sm:$0xff]
      %v347 = vld [vmem:[%s328 + $0x58] sm:$0xff]
      %v348 = vld [vmem:[%s328 + $0x60] sm:$0xff]
      %v349 = vld [vmem:[%s328 + $0x68] sm:$0xff]
      %v350 = vld [vmem:[%s328 + $0x70] sm:$0xff]
      %v351 = vld [vmem:[%s328 + $0x78] sm:$0xff]
      %v352 = vld [vmem:[%s1] sm:$0xff]
      %v353 = vld [vmem:[%s1 + $0x8] sm:$0xff]
      %v354 = vld [vmem:[%s2] sm:$0x1]
      %v356 = vlaneseq
      %v357 = vshrl.u32 %v356, 7
      %v358 = vsub.s32 0, %v357
      %v359 = vrot.slane %v354, %v358
      %vm361 = vcmask 130048
      %v363 = vsel %vm361, %v336, 0
      %v366 = vsel %vm361, %v337, 0
      %v369 = vsel %vm361, %v338, 0
      %v372 = vsel %vm361, %v339, 0
      %v375 = vsel %vm361, %v340, 0
      %v378 = vsel %vm361, %v341, 0
      %v381 = vsel %vm361, %v342, 0
      %v384 = vsel %vm361, %v343, 0
      %v387 = vsel %vm361, %v344, 0
      %v390 = vsel %vm361, %v345, 0
      %v393 = vsel %vm361, %v346, 0
      %v396 = vsel %vm361, %v347, 0
      %v399 = vsel %vm361, %v348, 0
      %v402 = vsel %vm361, %v349, 0
      %v405 = vsel %vm361, %v350, 0
      %v408 = vsel %vm361, %v351, 0
      %410 = vmatprep.subr.mxu0 0.0
      %411 = vmatpush1.msra.mxu0 %v352
      %412 = vmatprep.subr.mxu0 0.0
      %413 = vmatpush1.msra.mxu0 %v353
      %414 = vmatprep.subr.mxu0 0.0
      %415 = vmatpush1.msra.mxu0 0.0
      %416 = vmatprep.subr.mxu0 0.0
      %417 = vmatpush1.msra.mxu0 0.0
      %418 = vmatprep.subr.mxu0 0.0
      %419 = vmatpush1.msra.mxu0 0.0
      %420 = vmatprep.subr.mxu0 0.0
      %421 = vmatpush1.msra.mxu0 0.0
      %422 = vmatprep.subr.mxu0 0.0
      %423 = vmatpush1.msra.mxu0 0.0
      %424 = vmatprep.subr.mxu0 0.0
      %425 = vmatpush1.msra.mxu0 0.0
      %426 = vmatprep.subr.mxu0 0.0
      %427 = vmatpush1.msra.mxu0 0.0
      %428 = vmatprep.subr.mxu0 0.0
      %429 = vmatpush1.msra.mxu0 0.0
      %430 = vmatprep.subr.mxu0 0.0
      %431 = vmatpush1.msra.mxu0 0.0
      %432 = vmatprep.subr.mxu0 0.0
      %433 = vmatpush1.msra.mxu0 0.0
      %434 = vmatprep.subr.mxu0 0.0
      %435 = vmatpush1.msra.mxu0 0.0
      %436 = vmatprep.subr.mxu0 0.0
      %437 = vmatpush1.msra.mxu0 0.0
      %438 = vmatprep.subr.mxu0 0.0
      %439 = vmatpush1.msra.mxu0 0.0
      %440 = vmatprep.subr.mxu0 0.0
      %441 = vmatpush1.msra.mxu0 0.0
      %442 = vmatprep.subr.mxu0 0.0
      %443 = vmatpush1.msra.mxu0 0.0
      %444 = vmatprep.subr.mxu0 0.0
      %445 = vmatpush1.msra.mxu0 0.0
      %446 = vmatprep.subr.mxu0 0.0
      %447 = vmatpush1.msra.mxu0 0.0
      %448 = vmatprep.subr.mxu0 0.0
      %449 = vmatpush1.msra.mxu0 0.0
      %450 = vmatprep.subr.mxu0 0.0
      %451 = vmatpush1.msra.mxu0 0.0
      %452 = vmatprep.subr.mxu0 0.0
      %453 = vmatpush1.msra.mxu0 0.0
      %454 = vmatprep.subr.mxu0 0.0
      %455 = vmatpush1.msra.mxu0 0.0
      %456 = vmatprep.subr.mxu0 0.0
      %457 = vmatpush1.msra.mxu0 0.0
      %458 = vmatprep.subr.mxu0 0.0
      %459 = vmatpush1.msra.mxu0 0.0
      %460 = vmatprep.subr.mxu0 0.0
      %461 = vmatpush1.msra.mxu0 0.0
      %462 = vmatprep.subr.mxu0 0.0
      %463 = vmatpush1.msra.mxu0 0.0
      %464 = vmatprep.subr.mxu0 0.0
      %465 = vmatpush1.msra.mxu0 0.0
      %466 = vmatprep.subr.mxu0 0.0
      %467 = vmatpush1.msra.mxu0 0.0
      %468 = vmatprep.subr.mxu0 0.0
      %469 = vmatpush1.msra.mxu0 0.0
      %470 = vmatprep.subr.mxu0 0.0
      %471 = vmatpush1.msra.mxu0 0.0
      %472 = vmatprep.subr.mxu0 0.0
      %473 = vmatpush1.msra.mxu0 0.0
      %474 = vmatprep.mubr.f32.mxu0 0.0
      %475 = vmatmul.mubr.f32.gmra.mrb[0].mxu0 %v363
      %v476 = vpop.f32.mrb[0].mxu0
      %v477 = vadd.f32 %v359, %v476
      %v478 = vpop.f32.mrb[0].mxu0
      %479 = vmatprep.mubr.f32.mxu0 0.0
      %480 = vmatmul.mubr.f32.gmra.mrb[0].mxu0 %v366
      %v481 = vpop.f32.mrb[0].mxu0
      %v482 = vadd.f32 %v359, %v481
      %v483 = vpop.f32.mrb[0].mxu0
      %484 = vmatprep.mubr.f32.mxu0 0.0
      %485 = vmatmul.mubr.f32.gmra.mrb[0].mxu0 %v369
      %v486 = vpop.f32.mrb[0].mxu0
      %v487 = vadd.f32 %v359, %v486
      %v488 = vpop.f32.mrb[0].mxu0
      %489 = vmatprep.mubr.f32.mxu0 0.0
      %490 = vmatmul.mubr.f32.gmra.mrb[0].mxu0 %v372
      %v491 = vpop.f32.mrb[0].mxu0
      %v492 = vadd.f32 %v359, %v491
      %v493 = vpop.f32.mrb[0].mxu0
      %494 = vmatprep.mubr.f32.mxu0 0.0
      %495 = vmatmul.mubr.f32.gmra.mrb[0].mxu0 %v375
      %v496 = vpop.f32.mrb[0].mxu0
      %v497 = vadd.f32 %v359, %v496
      %v498 = vpop.f32.mrb[0].mxu0
      %499 = vmatprep.mubr.f32.mxu0 0.0
      %500 = vmatmul.mubr.f32.gmra.mrb[0].mxu0 %v378
      %v501 = vpop.f32.mrb[0].mxu0
      %v502 = vadd.f32 %v359, %v501
      %v503 = vpop.f32.mrb[0].mxu0
      %504 = vmatprep.mubr.f32.mxu0 0.0
      %505 = vmatmul.mubr.f32.gmra.mrb[0].mxu0 %v381
      %v506 = vpop.f32.mrb[0].mxu0
      %v507 = vadd.f32 %v359, %v506
      %v508 = vpop.f32.mrb[0].mxu0
      %509 = vmatprep.mubr.f32.mxu0 0.0
      %510 = vmatmul.mubr.f32.gmra.mrb[0].mxu0 %v384
      %v511 = vpop.f32.mrb[0].mxu0
      %v512 = vadd.f32 %v359, %v511
      %v513 = vpop.f32.mrb[0].mxu0
      %514 = vmatprep.mubr.f32.mxu0 0.0
      %515 = vmatmul.mubr.f32.gmra.mrb[0].mxu0 %v387
      %v516 = vpop.f32.mrb[0].mxu0
      %v517 = vadd.f32 %v359, %v516
      %v518 = vpop.f32.mrb[0].mxu0
      %519 = vmatprep.mubr.f32.mxu0 0.0
      %520 = vmatmul.mubr.f32.gmra.mrb[0].mxu0 %v390
      %v521 = vpop.f32.mrb[0].mxu0
      %v522 = vadd.f32 %v359, %v521
      %v523 = vpop.f32.mrb[0].mxu0
      %524 = vmatprep.mubr.f32.mxu0 0.0
      %525 = vmatmul.mubr.f32.gmra.mrb[0].mxu0 %v393
      %v526 = vpop.f32.mrb[0].mxu0
      %v527 = vadd.f32 %v359, %v526
      %v528 = vpop.f32.mrb[0].mxu0
      %529 = vmatprep.mubr.f32.mxu0 0.0
      %530 = vmatmul.mubr.f32.gmra.mrb[0].mxu0 %v396
      %v531 = vpop.f32.mrb[0].mxu0
      %v532 = vadd.f32 %v359, %v531
      %v533 = vpop.f32.mrb[0].mxu0
      %534 = vmatprep.mubr.f32.mxu0 0.0
      %535 = vmatmul.mubr.f32.gmra.mrb[0].mxu0 %v399
      %v536 = vpop.f32.mrb[0].mxu0
      %v537 = vadd.f32 %v359, %v536
      %v538 = vpop.f32.mrb[0].mxu0
      %539 = vmatprep.mubr.f32.mxu0 0.0
      %540 = vmatmul.mubr.f32.gmra.mrb[0].mxu0 %v402
      %v541 = vpop.f32.mrb[0].mxu0
      %v542 = vadd.f32 %v359, %v541
      %v543 = vpop.f32.mrb[0].mxu0
      %544 = vmatprep.mubr.f32.mxu0 0.0
      %545 = vmatmul.mubr.f32.gmra.mrb[0].mxu0 %v405
      %v546 = vpop.f32.mrb[0].mxu0
      %v547 = vadd.f32 %v359, %v546
      %v548 = vpop.f32.mrb[0].mxu0
      %549 = vmatprep.mubr.f32.mxu0 0.0
      %550 = vmatmul.mubr.f32.gmra.mrb[0].mxu0 %v408
      %v551 = vpop.f32.mrb[0].mxu0
      %v552 = vadd.f32 %v359, %v551
      %v553 = vpop.f32.mrb[0].mxu0
      %554 = vdwg.mxu0
      %v555 = vmax.f32 %v477, 0.0
      %v556 = vmax.f32 %v482, 0.0
      %v557 = vmax.f32 %v487, 0.0
      %v558 = vmax.f32 %v492, 0.0
      %v559 = vmax.f32 %v497, 0.0
      %v560 = vmax.f32 %v502, 0.0
      %v561 = vmax.f32 %v507, 0.0
      %v562 = vmax.f32 %v512, 0.0
      %v563 = vmax.f32 %v517, 0.0
      %v564 = vmax.f32 %v522, 0.0
      %v565 = vmax.f32 %v527, 0.0
      %v566 = vmax.f32 %v532, 0.0
      %v567 = vmax.f32 %v537, 0.0
      %v568 = vmax.f32 %v542, 0.0
      %v569 = vmax.f32 %v547, 0.0
      %v570 = vmax.f32 %v552, 0.0
      %v571 = vld [vmem:[%s3] sm:$0xff]
      %v572 = vld [vmem:[%s3 + $0x8] sm:$0xf]
      %v573 = vld [vmem:[%s4] sm:$0x1]
      %v575 = vlaneseq
      %v576 = vshrl.u32 %v575, 7
      %v577 = vsub.s32 0, %v576
      %v578 = vrot.slane %v573, %v577
      %vm580 = vcmask 97280
      %v582 = vsel %vm580, %v555, 0
      %v585 = vsel %vm580, %v556, 0
      %v588 = vsel %vm580, %v557, 0
      %v591 = vsel %vm580, %v558, 0
      %v594 = vsel %vm580, %v559, 0
      %v597 = vsel %vm580, %v560, 0
      %v600 = vsel %vm580, %v561, 0
      %v603 = vsel %vm580, %v562, 0
      %v606 = vsel %vm580, %v563, 0
      %v609 = vsel %vm580, %v564, 0
      %v612 = vsel %vm580, %v565, 0
      %v615 = vsel %vm580, %v566, 0
      %v618 = vsel %vm580, %v567, 0
      %v621 = vsel %vm580, %v568, 0
      %v624 = vsel %vm580, %v569, 0
      %v627 = vsel %vm580, %v570, 0
      %vm629 = vcmask 1043456
      %v631 = vsel %vm629, %v572, 0
      %633 = vmatprep.subr.mxu0 0.0
      %634 = vmatpush1.msra.mxu0 %v571
      %635 = vmatprep.subr.mxu0 0.0
      %636 = vmatpush1.msra.mxu0 %v631
      %637 = vmatprep.subr.mxu0 0.0
      %638 = vmatpush1.msra.mxu0 0.0
      %639 = vmatprep.subr.mxu0 0.0
      %640 = vmatpush1.msra.mxu0 0.0
      %641 = vmatprep.subr.mxu0 0.0
      %642 = vmatpush1.msra.mxu0 0.0
      %643 = vmatprep.subr.mxu0 0.0
      %644 = vmatpush1.msra.mxu0 0.0
      %645 = vmatprep.subr.mxu0 0.0
      %646 = vmatpush1.msra.mxu0 0.0
      %647 = vmatprep.subr.mxu0 0.0
      %648 = vmatpush1.msra.mxu0 0.0
      %649 = vmatprep.subr.mxu0 0.0
      %650 = vmatpush1.msra.mxu0 0.0
      %651 = vmatprep.subr.mxu0 0.0
      %652 = vmatpush1.msra.mxu0 0.0
      %653 = vmatprep.subr.mxu0 0.0
      %654 = vmatpush1.msra.mxu0 0.0
      %655 = vmatprep.subr.mxu0 0.0
      %656 = vmatpush1.msra.mxu0 0.0
      %657 = vmatprep.subr.mxu0 0.0
      %658 = vmatpush1.msra.mxu0 0.0
      %659 = vmatprep.subr.mxu0 0.0
      %660 = vmatpush1.msra.mxu0 0.0
      %661 = vmatprep.subr.mxu0 0.0
      %662 = vmatpush1.msra.mxu0 0.0
      %663 = vmatprep.subr.mxu0 0.0
      %664 = vmatpush1.msra.mxu0 0.0
      %665 = vmatprep.subr.mxu0 0.0
      %666 = vmatpush1.msra.mxu0 0.0
      %667 = vmatprep.subr.mxu0 0.0
      %668 = vmatpush1.msra.mxu0 0.0
      %669 = vmatprep.subr.mxu0 0.0
      %670 = vmatpush1.msra.mxu0 0.0
      %671 = vmatprep.subr.mxu0 0.0
      %672 = vmatpush1.msra.mxu0 0.0
      %673 = vmatprep.subr.mxu0 0.0
      %674 = vmatpush1.msra.mxu0 0.0
      %675 = vmatprep.subr.mxu0 0.0
      %676 = vmatpush1.msra.mxu0 0.0
      %677 = vmatprep.subr.mxu0 0.0
      %678 = vmatpush1.msra.mxu0 0.0
      %679 = vmatprep.subr.mxu0 0.0
      %680 = vmatpush1.msra.mxu0 0.0
      %681 = vmatprep.subr.mxu0 0.0
      %682 = vmatpush1.msra.mxu0 0.0
      %683 = vmatprep.subr.mxu0 0.0
      %684 = vmatpush1.msra.mxu0 0.0
      %685 = vmatprep.subr.mxu0 0.0
      %686 = vmatpush1.msra.mxu0 0.0
      %687 = vmatprep.subr.mxu0 0.0
      %688 = vmatpush1.msra.mxu0 0.0
      %689 = vmatprep.subr.mxu0 0.0
      %690 = vmatpush1.msra.mxu0 0.0
      %691 = vmatprep.subr.mxu0 0.0
      %692 = vmatpush1.msra.mxu0 0.0
      %693 = vmatprep.subr.mxu0 0.0
      %694 = vmatpush1.msra.mxu0 0.0
      %695 = vmatprep.subr.mxu0 0.0
      %696 = vmatpush1.msra.mxu0 0.0
      %697 = vmatprep.mubr.f32.mxu0 0.0
      %698 = vmatmul.mubr.f32.gmra.mrb[0].mxu0 %v582
      %v699 = vpop.f32.mrb[0].mxu0
      %v700 = vadd.f32 %v578, %v699
      %v701 = vpop.f32.mrb[0].mxu0
      %702 = vmatprep.mubr.f32.mxu0 0.0
      %703 = vmatmul.mubr.f32.gmra.mrb[0].mxu0 %v585
      %v704 = vpop.f32.mrb[0].mxu0
      %v705 = vadd.f32 %v578, %v704
      %v706 = vpop.f32.mrb[0].mxu0
      %707 = vmatprep.mubr.f32.mxu0 0.0
      %708 = vmatmul.mubr.f32.gmra.mrb[0].mxu0 %v588
      %v709 = vpop.f32.mrb[0].mxu0
      %v710 = vadd.f32 %v578, %v709
      %v711 = vpop.f32.mrb[0].mxu0
      %712 = vmatprep.mubr.f32.mxu0 0.0
      %713 = vmatmul.mubr.f32.gmra.mrb[0].mxu0 %v591
      %v714 = vpop.f32.mrb[0].mxu0
      %v715 = vadd.f32 %v578, %v714
      %v716 = vpop.f32.mrb[0].mxu0
      %717 = vmatprep.mubr.f32.mxu0 0.0
      %718 = vmatmul.mubr.f32.gmra.mrb[0].mxu0 %v594
      %v719 = vpop.f32.mrb[0].mxu0
      %v720 = vadd.f32 %v578, %v719
      %v721 = vpop.f32.mrb[0].mxu0
      %722 = vmatprep.mubr.f32.mxu0 0.0
      %723 = vmatmul.mubr.f32.gmra.mrb[0].mxu0 %v597
      %v724 = vpop.f32.mrb[0].mxu0
      %v725 = vadd.f32 %v578, %v724
      %v726 = vpop.f32.mrb[0].mxu0
      %727 = vmatprep.mubr.f32.mxu0 0.0
      %728 = vmatmul.mubr.f32.gmra.mrb[0].mxu0 %v600
      %v729 = vpop.f32.mrb[0].mxu0
      %v730 = vadd.f32 %v578, %v729
      %v731 = vpop.f32.mrb[0].mxu0
      %732 = vmatprep.mubr.f32.mxu0 0.0
      %733 = vmatmul.mubr.f32.gmra.mrb[0].mxu0 %v603
      %v734 = vpop.f32.mrb[0].mxu0
      %v735 = vadd.f32 %v578, %v734
      %v736 = vpop.f32.mrb[0].mxu0
      %737 = vmatprep.mubr.f32.mxu0 0.0
      %738 = vmatmul.mubr.f32.gmra.mrb[0].mxu0 %v606
      %v739 = vpop.f32.mrb[0].mxu0
      %v740 = vadd.f32 %v578, %v739
      %v741 = vpop.f32.mrb[0].mxu0
      %742 = vmatprep.mubr.f32.mxu0 0.0
      %743 = vmatmul.mubr.f32.gmra.mrb[0].mxu0 %v609
      %v744 = vpop.f32.mrb[0].mxu0
      %v745 = vadd.f32 %v578, %v744
      %v746 = vpop.f32.mrb[0].mxu0
      %747 = vmatprep.mubr.f32.mxu0 0.0
      %748 = vmatmul.mubr.f32.gmra.mrb[0].mxu0 %v612
      %v749 = vpop.f32.mrb[0].mxu0
      %v750 = vadd.f32 %v578, %v749
      %v751 = vpop.f32.mrb[0].mxu0
      %752 = vmatprep.mubr.f32.mxu0 0.0
      %753 = vmatmul.mubr.f32.gmra.mrb[0].mxu0 %v615
      %v754 = vpop.f32.mrb[0].mxu0
      %v755 = vadd.f32 %v578, %v754
      %v756 = vpop.f32.mrb[0].mxu0
      %757 = vmatprep.mubr.f32.mxu0 0.0
      %758 = vmatmul.mubr.f32.gmra.mrb[0].mxu0 %v618
      %v759 = vpop.f32.mrb[0].mxu0
      %v760 = vadd.f32 %v578, %v759
      %v761 = vpop.f32.mrb[0].mxu0
      %762 = vmatprep.mubr.f32.mxu0 0.0
      %763 = vmatmul.mubr.f32.gmra.mrb[0].mxu0 %v621
      %v764 = vpop.f32.mrb[0].mxu0
      %v765 = vadd.f32 %v578, %v764
      %v766 = vpop.f32.mrb[0].mxu0
      %767 = vmatprep.mubr.f32.mxu0 0.0
      %768 = vmatmul.mubr.f32.gmra.mrb[0].mxu0 %v624
      %v769 = vpop.f32.mrb[0].mxu0
      %v770 = vadd.f32 %v578, %v769
      %v771 = vpop.f32.mrb[0].mxu0
      %772 = vmatprep.mubr.f32.mxu0 0.0
      %773 = vmatmul.mubr.f32.gmra.mrb[0].mxu0 %v627
      %v774 = vpop.f32.mrb[0].mxu0
      %v775 = vadd.f32 %v578, %v774
      %v776 = vpop.f32.mrb[0].mxu0
      %777 = vdwg.mxu0
      %v778 = vtanh.pop %v700
      %v779 = vtanh.pop %v705
      %v780 = vtanh.pop %v710
      %v781 = vtanh.pop %v715
      %v782 = vtanh.pop %v720
      %v783 = vtanh.pop %v725
      %v784 = vtanh.pop %v730
      %v785 = vtanh.pop %v735
      %v786 = vtanh.pop %v740
      %v787 = vtanh.pop %v745
      %v788 = vtanh.pop %v750
      %v789 = vtanh.pop %v755
      %v790 = vtanh.pop %v760
      %v791 = vtanh.pop %v765
      %v792 = vtanh.pop %v770
      %v793 = vtanh.pop %v775
      %v794 = vld [vmem:[%s5] sm:$0xff]
      %v795 = vld [vmem:[%s6] sm:$0x1]
      %v797 = vlaneseq
      %v798 = vshrl.u32 %v797, 7
      %v799 = vsub.s32 0, %v798
      %v800 = vrot.slane %v795, %v799
      %vm802 = vcmask 64512
      %v804 = vsel %vm802, %v778, 0
      %v807 = vsel %vm802, %v779, 0
      %v810 = vsel %vm802, %v780, 0
      %v813 = vsel %vm802, %v781, 0
      %v816 = vsel %vm802, %v782, 0
      %v819 = vsel %vm802, %v783, 0
      %v822 = vsel %vm802, %v784, 0
      %v825 = vsel %vm802, %v785, 0
      %v828 = vsel %vm802, %v786, 0
      %v831 = vsel %vm802, %v787, 0
      %v834 = vsel %vm802, %v788, 0
      %v837 = vsel %vm802, %v789, 0
      %v840 = vsel %vm802, %v790, 0
      %v843 = vsel %vm802, %v791, 0
      %v846 = vsel %vm802, %v792, 0
      %v849 = vsel %vm802, %v793, 0
      %851 = vmatprep.subr.mxu0 0.0
      %852 = vmatpush1.msra.mxu0 %v794
      %853 = vmatprep.subr.mxu0 0.0
      %854 = vmatpush1.msra.mxu0 0.0
      %855 = vmatprep.subr.mxu0 0.0
      %856 = vmatpush1.msra.mxu0 0.0
      %857 = vmatprep.subr.mxu0 0.0
      %858 = vmatpush1.msra.mxu0 0.0
      %859 = vmatprep.subr.mxu0 0.0
      %860 = vmatpush1.msra.mxu0 0.0
      %861 = vmatprep.subr.mxu0 0.0
      %862 = vmatpush1.msra.mxu0 0.0
      %863 = vmatprep.subr.mxu0 0.0
      %864 = vmatpush1.msra.mxu0 0.0
      %865 = vmatprep.subr.mxu0 0.0
      %866 = vmatpush1.msra.mxu0 0.0
      %867 = vmatprep.subr.mxu0 0.0
      %868 = vmatpush1.msra.mxu0 0.0
      %869 = vmatprep.subr.mxu0 0.0
      %870 = vmatpush1.msra.mxu0 0.0
      %871 = vmatprep.subr.mxu0 0.0
      %872 = vmatpush1.msra.mxu0 0.0
      %873 = vmatprep.subr.mxu0 0.0
      %874 = vmatpush1.msra.mxu0 0.0
      %875 = vmatprep.subr.mxu0 0.0
      %876 = vmatpush1.msra.mxu0 0.0
      %877 = vmatprep.subr.mxu0 0.0
      %878 = vmatpush1.msra.mxu0 0.0
      %879 = vmatprep.subr.mxu0 0.0
      %880 = vmatpush1.msra.mxu0 0.0
      %881 = vmatprep.subr.mxu0 0.0
      %882 = vmatpush1.msra.mxu0 0.0
      %883 = vmatprep.subr.mxu0 0.0
      %884 = vmatpush1.msra.mxu0 0.0
      %885 = vmatprep.subr.mxu0 0.0
      %886 = vmatpush1.msra.mxu0 0.0
      %887 = vmatprep.subr.mxu0 0.0
      %888 = vmatpush1.msra.mxu0 0.0
      %889 = vmatprep.subr.mxu0 0.0
      %890 = vmatpush1.msra.mxu0 0.0
      %891 = vmatprep.subr.mxu0 0.0
      %892 = vmatpush1.msra.mxu0 0.0
      %893 = vmatprep.subr.mxu0 0.0
      %894 = vmatpush1.msra.mxu0 0.0
      %895 = vmatprep.subr.mxu0 0.0
      %896 = vmatpush1.msra.mxu0 0.0
      %897 = vmatprep.subr.mxu0 0.0
      %898 = vmatpush1.msra.mxu0 0.0
      %899 = vmatprep.subr.mxu0 0.0
      %900 = vmatpush1.msra.mxu0 0.0
      %901 = vmatprep.subr.mxu0 0.0
      %902 = vmatpush1.msra.mxu0 0.0
      %903 = vmatprep.subr.mxu0 0.0
      %904 = vmatpush1.msra.mxu0 0.0
      %905 = vmatprep.subr.mxu0 0.0
      %906 = vmatpush1.msra.mxu0 0.0
      %907 = vmatprep.subr.mxu0 0.0
      %908 = vmatpush1.msra.mxu0 0.0
      %909 = vmatprep.subr.mxu0 0.0
      %910 = vmatpush1.msra.mxu0 0.0
      %911 = vmatprep.subr.mxu0 0.0
      %912 = vmatpush1.msra.mxu0 0.0
      %913 = vmatprep.subr.mxu0 0.0
      %914 = vmatpush1.msra.mxu0 0.0
      %915 = vmatprep.mubr.f32.mxu0 0.0
      %916 = vmatmul.mubr.f32.gmra.mrb[0].mxu0 %v804
      %v917 = vpop.f32.mrb[0].mxu0
      %v918 = vadd.f32 %v800, %v917
      %v919 = vpop.f32.mrb[0].mxu0
      %920 = vmatprep.mubr.f32.mxu0 0.0
      %921 = vmatmul.mubr.f32.gmra.mrb[0].mxu0 %v807
      %v922 = vpop.f32.mrb[0].mxu0
      %v923 = vadd.f32 %v800, %v922
      %v924 = vpop.f32.mrb[0].mxu0
      %925 = vmatprep.mubr.f32.mxu0 0.0
      %926 = vmatmul.mubr.f32.gmra.mrb[0].mxu0 %v810
      %v927 = vpop.f32.mrb[0].mxu0
      %v928 = vadd.f32 %v800, %v927
      %v929 = vpop.f32.mrb[0].mxu0
      %930 = vmatprep.mubr.f32.mxu0 0.0
      %931 = vmatmul.mubr.f32.gmra.mrb[0].mxu0 %v813
      %v932 = vpop.f32.mrb[0].mxu0
      %v933 = vadd.f32 %v800, %v932
      %v934 = vpop.f32.mrb[0].mxu0
      %935 = vmatprep.mubr.f32.mxu0 0.0
      %936 = vmatmul.mubr.f32.gmra.mrb[0].mxu0 %v816
      %v937 = vpop.f32.mrb[0].mxu0
      %v938 = vadd.f32 %v800, %v937
      %v939 = vpop.f32.mrb[0].mxu0
      %940 = vmatprep.mubr.f32.mxu0 0.0
      %941 = vmatmul.mubr.f32.gmra.mrb[0].mxu0 %v819
      %v942 = vpop.f32.mrb[0].mxu0
      %v943 = vadd.f32 %v800, %v942
      %v944 = vpop.f32.mrb[0].mxu0
      %945 = vmatprep.mubr.f32.mxu0 0.0
      %946 = vmatmul.mubr.f32.gmra.mrb[0].mxu0 %v822
      %v947 = vpop.f32.mrb[0].mxu0
      %v948 = vadd.f32 %v800, %v947
      %v949 = vpop.f32.mrb[0].mxu0
      %950 = vmatprep.mubr.f32.mxu0 0.0
      %951 = vmatmul.mubr.f32.gmra.mrb[0].mxu0 %v825
      %v952 = vpop.f32.mrb[0].mxu0
      %v953 = vadd.f32 %v800, %v952
      %v954 = vpop.f32.mrb[0].mxu0
      %955 = vmatprep.mubr.f32.mxu0 0.0
      %956 = vmatmul.mubr.f32.gmra.mrb[0].mxu0 %v828
      %v957 = vpop.f32.mrb[0].mxu0
      %v958 = vadd.f32 %v800, %v957
      %v959 = vpop.f32.mrb[0].mxu0
      %960 = vmatprep.mubr.f32.mxu0 0.0
      %961 = vmatmul.mubr.f32.gmra.mrb[0].mxu0 %v831
      %v962 = vpop.f32.mrb[0].mxu0
      %v963 = vadd.f32 %v800, %v962
      %v964 = vpop.f32.mrb[0].mxu0
      %965 = vmatprep.mubr.f32.mxu0 0.0
      %966 = vmatmul.mubr.f32.gmra.mrb[0].mxu0 %v834
      %v967 = vpop.f32.mrb[0].mxu0
      %v968 = vadd.f32 %v800, %v967
      %v969 = vpop.f32.mrb[0].mxu0
      %970 = vmatprep.mubr.f32.mxu0 0.0
      %971 = vmatmul.mubr.f32.gmra.mrb[0].mxu0 %v837
      %v972 = vpop.f32.mrb[0].mxu0
      %v973 = vadd.f32 %v800, %v972
      %v974 = vpop.f32.mrb[0].mxu0
      %975 = vmatprep.mubr.f32.mxu0 0.0
      %976 = vmatmul.mubr.f32.gmra.mrb[0].mxu0 %v840
      %v977 = vpop.f32.mrb[0].mxu0
      %v978 = vadd.f32 %v800, %v977
      %v979 = vpop.f32.mrb[0].mxu0
      %980 = vmatprep.mubr.f32.mxu0 0.0
      %981 = vmatmul.mubr.f32.gmra.mrb[0].mxu0 %v843
      %v982 = vpop.f32.mrb[0].mxu0
      %v983 = vadd.f32 %v800, %v982
      %v984 = vpop.f32.mrb[0].mxu0
      %985 = vmatprep.mubr.f32.mxu0 0.0
      %986 = vmatmul.mubr.f32.gmra.mrb[0].mxu0 %v846
      %v987 = vpop.f32.mrb[0].mxu0
      %v988 = vadd.f32 %v800, %v987
      %v989 = vpop.f32.mrb[0].mxu0
      %990 = vmatprep.mubr.f32.mxu0 0.0
      %991 = vmatmul.mubr.f32.gmra.mrb[0].mxu0 %v849
      %v992 = vpop.f32.mrb[0].mxu0
      %v993 = vadd.f32 %v800, %v992
      %v994 = vpop.f32.mrb[0].mxu0
      %995 = vdwg.mxu0
      %v996 = vmax.f32 %v918, 0.0
      %v997 = vmax.f32 %v923, 0.0
      %v998 = vmax.f32 %v928, 0.0
      %v999 = vmax.f32 %v933, 0.0
      %v1000 = vmax.f32 %v938, 0.0
      %v1001 = vmax.f32 %v943, 0.0
      %v1002 = vmax.f32 %v948, 0.0
      %v1003 = vmax.f32 %v953, 0.0
      %v1004 = vmax.f32 %v958, 0.0
      %v1005 = vmax.f32 %v963, 0.0
      %v1006 = vmax.f32 %v968, 0.0
      %v1007 = vmax.f32 %v973, 0.0
      %v1008 = vmax.f32 %v978, 0.0
      %v1009 = vmax.f32 %v983, 0.0
      %v1010 = vmax.f32 %v988, 0.0
      %v1011 = vmax.f32 %v993, 0.0
      %v1012 = vld [vmem:[%s7] sm:$0xff]
      %v1013 = vld [vmem:[%s7 + $0x8] sm:$0xf]
      %v1014 = vld [vmem:[%s8] sm:$0x1]
      %v1016 = vlaneseq
      %v1017 = vshrl.u32 %v1016, 7
      %v1018 = vsub.s32 0, %v1017
      %v1019 = vrot.slane %v1014, %v1018
      %v1022 = vsel %vm580, %v996, 0
      %v1025 = vsel %vm580, %v997, 0
      %v1028 = vsel %vm580, %v998, 0
      %v1031 = vsel %vm580, %v999, 0
      %v1034 = vsel %vm580, %v1000, 0
      %v1037 = vsel %vm580, %v1001, 0
      %v1040 = vsel %vm580, %v1002, 0
      %v1043 = vsel %vm580, %v1003, 0
      %v1046 = vsel %vm580, %v1004, 0
      %v1049 = vsel %vm580, %v1005, 0
      %v1052 = vsel %vm580, %v1006, 0
      %v1055 = vsel %vm580, %v1007, 0
      %v1058 = vsel %vm580, %v1008, 0
      %v1061 = vsel %vm580, %v1009, 0
      %v1064 = vsel %vm580, %v1010, 0
      %v1067 = vsel %vm580, %v1011, 0
      %v1070 = vsel %vm629, %v1013, 0
      %1072 = vmatprep.subr.mxu0 0.0
      %1073 = vmatpush1.msra.mxu0 %v1012
      %1074 = vmatprep.subr.mxu0 0.0
      %1075 = vmatpush1.msra.mxu0 %v1070
      %1076 = vmatprep.subr.mxu0 0.0
      %1077 = vmatpush1.msra.mxu0 0.0
      %1078 = vmatprep.subr.mxu0 0.0
      %1079 = vmatpush1.msra.mxu0 0.0
      %1080 = vmatprep.subr.mxu0 0.0
      %1081 = vmatpush1.msra.mxu0 0.0
      %1082 = vmatprep.subr.mxu0 0.0
      %1083 = vmatpush1.msra.mxu0 0.0
      %1084 = vmatprep.subr.mxu0 0.0
      %1085 = vmatpush1.msra.mxu0 0.0
      %1086 = vmatprep.subr.mxu0 0.0
      %1087 = vmatpush1.msra.mxu0 0.0
      %1088 = vmatprep.subr.mxu0 0.0
      %1089 = vmatpush1.msra.mxu0 0.0
      %1090 = vmatprep.subr.mxu0 0.0
      %1091 = vmatpush1.msra.mxu0 0.0
      %1092 = vmatprep.subr.mxu0 0.0
      %1093 = vmatpush1.msra.mxu0 0.0
      %1094 = vmatprep.subr.mxu0 0.0
      %1095 = vmatpush1.msra.mxu0 0.0
      %1096 = vmatprep.subr.mxu0 0.0
      %1097 = vmatpush1.msra.mxu0 0.0
      %1098 = vmatprep.subr.mxu0 0.0
      %1099 = vmatpush1.msra.mxu0 0.0
      %1100 = vmatprep.subr.mxu0 0.0
      %1101 = vmatpush1.msra.mxu0 0.0
      %1102 = vmatprep.subr.mxu0 0.0
      %1103 = vmatpush1.msra.mxu0 0.0
      %1104 = vmatprep.subr.mxu0 0.0
      %1105 = vmatpush1.msra.mxu0 0.0
      %1106 = vmatprep.subr.mxu0 0.0
      %1107 = vmatpush1.msra.mxu0 0.0
      %1108 = vmatprep.subr.mxu0 0.0
      %1109 = vmatpush1.msra.mxu0 0.0
      %1110 = vmatprep.subr.mxu0 0.0
      %1111 = vmatpush1.msra.mxu0 0.0
      %1112 = vmatprep.subr.mxu0 0.0
      %1113 = vmatpush1.msra.mxu0 0.0
      %1114 = vmatprep.subr.mxu0 0.0
      %1115 = vmatpush1.msra.mxu0 0.0
      %1116 = vmatprep.subr.mxu0 0.0
      %1117 = vmatpush1.msra.mxu0 0.0
      %1118 = vmatprep.subr.mxu0 0.0
      %1119 = vmatpush1.msra.mxu0 0.0
      %1120 = vmatprep.subr.mxu0 0.0
      %1121 = vmatpush1.msra.mxu0 0.0
      %1122 = vmatprep.subr.mxu0 0.0
      %1123 = vmatpush1.msra.mxu0 0.0
      %1124 = vmatprep.subr.mxu0 0.0
      %1125 = vmatpush1.msra.mxu0 0.0
      %1126 = vmatprep.subr.mxu0 0.0
      %1127 = vmatpush1.msra.mxu0 0.0
      %1128 = vmatprep.subr.mxu0 0.0
      %1129 = vmatpush1.msra.mxu0 0.0
      %1130 = vmatprep.subr.mxu0 0.0
      %1131 = vmatpush1.msra.mxu0 0.0
      %1132 = vmatprep.subr.mxu0 0.0
      %1133 = vmatpush1.msra.mxu0 0.0
      %1134 = vmatprep.subr.mxu0 0.0
      %1135 = vmatpush1.msra.mxu0 0.0
      %1136 = vmatprep.mubr.f32.mxu0 0.0
      %1137 = vmatmul.mubr.f32.gmra.mrb[0].mxu0 %v1022
      %v1138 = vpop.f32.mrb[0].mxu0
      %v1139 = vadd.f32 %v1019, %v1138
      %v1140 = vpop.f32.mrb[0].mxu0
      %1141 = vmatprep.mubr.f32.mxu0 0.0
      %1142 = vmatmul.mubr.f32.gmra.mrb[0].mxu0 %v1025
      %v1143 = vpop.f32.mrb[0].mxu0
      %v1144 = vadd.f32 %v1019, %v1143
      %v1145 = vpop.f32.mrb[0].mxu0
      %1146 = vmatprep.mubr.f32.mxu0 0.0
      %1147 = vmatmul.mubr.f32.gmra.mrb[0].mxu0 %v1028
      %v1148 = vpop.f32.mrb[0].mxu0
      %v1149 = vadd.f32 %v1019, %v1148
      %v1150 = vpop.f32.mrb[0].mxu0
      %1151 = vmatprep.mubr.f32.mxu0 0.0
      %1152 = vmatmul.mubr.f32.gmra.mrb[0].mxu0 %v1031
      %v1153 = vpop.f32.mrb[0].mxu0
      %v1154 = vadd.f32 %v1019, %v1153
      %v1155 = vpop.f32.mrb[0].mxu0
      %1156 = vmatprep.mubr.f32.mxu0 0.0
      %1157 = vmatmul.mubr.f32.gmra.mrb[0].mxu0 %v1034
      %v1158 = vpop.f32.mrb[0].mxu0
      %v1159 = vadd.f32 %v1019, %v1158
      %v1160 = vpop.f32.mrb[0].mxu0
      %1161 = vmatprep.mubr.f32.mxu0 0.0
      %1162 = vmatmul.mubr.f32.gmra.mrb[0].mxu0 %v1037
      %v1163 = vpop.f32.mrb[0].mxu0
      %v1164 = vadd.f32 %v1019, %v1163
      %v1165 = vpop.f32.mrb[0].mxu0
      %1166 = vmatprep.mubr.f32.mxu0 0.0
      %1167 = vmatmul.mubr.f32.gmra.mrb[0].mxu0 %v1040
      %v1168 = vpop.f32.mrb[0].mxu0
      %v1169 = vadd.f32 %v1019, %v1168
      %v1170 = vpop.f32.mrb[0].mxu0
      %1171 = vmatprep.mubr.f32.mxu0 0.0
      %1172 = vmatmul.mubr.f32.gmra.mrb[0].mxu0 %v1043
      %v1173 = vpop.f32.mrb[0].mxu0
      %v1174 = vadd.f32 %v1019, %v1173
      %v1175 = vpop.f32.mrb[0].mxu0
      %1176 = vmatprep.mubr.f32.mxu0 0.0
      %1177 = vmatmul.mubr.f32.gmra.mrb[0].mxu0 %v1046
      %v1178 = vpop.f32.mrb[0].mxu0
      %v1179 = vadd.f32 %v1019, %v1178
      %v1180 = vpop.f32.mrb[0].mxu0
      %1181 = vmatprep.mubr.f32.mxu0 0.0
      %1182 = vmatmul.mubr.f32.gmra.mrb[0].mxu0 %v1049
      %v1183 = vpop.f32.mrb[0].mxu0
      %v1184 = vadd.f32 %v1019, %v1183
      %v1185 = vpop.f32.mrb[0].mxu0
      %1186 = vmatprep.mubr.f32.mxu0 0.0
      %1187 = vmatmul.mubr.f32.gmra.mrb[0].mxu0 %v1052
      %v1188 = vpop.f32.mrb[0].mxu0
      %v1189 = vadd.f32 %v1019, %v1188
      %v1190 = vpop.f32.mrb[0].mxu0
      %1191 = vmatprep.mubr.f32.mxu0 0.0
      %1192 = vmatmul.mubr.f32.gmra.mrb[0].mxu0 %v1055
      %v1193 = vpop.f32.mrb[0].mxu0
      %v1194 = vadd.f32 %v1019, %v1193
      %v1195 = vpop.f32.mrb[0].mxu0
      %1196 = vmatprep.mubr.f32.mxu0 0.0
      %1197 = vmatmul.mubr.f32.gmra.mrb[0].mxu0 %v1058
      %v1198 = vpop.f32.mrb[0].mxu0
      %v1199 = vadd.f32 %v1019, %v1198
      %v1200 = vpop.f32.mrb[0].mxu0
      %1201 = vmatprep.mubr.f32.mxu0 0.0
      %1202 = vmatmul.mubr.f32.gmra.mrb[0].mxu0 %v1061
      %v1203 = vpop.f32.mrb[0].mxu0
      %v1204 = vadd.f32 %v1019, %v1203
      %v1205 = vpop.f32.mrb[0].mxu0
      %1206 = vmatprep.mubr.f32.mxu0 0.0
      %1207 = vmatmul.mubr.f32.gmra.mrb[0].mxu0 %v1064
      %v1208 = vpop.f32.mrb[0].mxu0
      %v1209 = vadd.f32 %v1019, %v1208
      %v1210 = vpop.f32.mrb[0].mxu0
      %1211 = vmatprep.mubr.f32.mxu0 0.0
      %1212 = vmatmul.mubr.f32.gmra.mrb[0].mxu0 %v1067
      %v1213 = vpop.f32.mrb[0].mxu0
      %v1214 = vadd.f32 %v1019, %v1213
      %v1215 = vpop.f32.mrb[0].mxu0
      %1216 = vdwg.mxu0
      %v1217 = vtanh.pop %v1139
      %v1218 = vtanh.pop %v1144
      %v1219 = vtanh.pop %v1149
      %v1220 = vtanh.pop %v1154
      %v1221 = vtanh.pop %v1159
      %v1222 = vtanh.pop %v1164
      %v1223 = vtanh.pop %v1169
      %v1224 = vtanh.pop %v1174
      %v1225 = vtanh.pop %v1179
      %v1226 = vtanh.pop %v1184
      %v1227 = vtanh.pop %v1189
      %v1228 = vtanh.pop %v1194
      %v1229 = vtanh.pop %v1199
      %v1230 = vtanh.pop %v1204
      %v1231 = vtanh.pop %v1209
      %v1232 = vtanh.pop %v1214
      %1233 = vst.msk [vmem:[%s334] sm:$0xff] %vm361, %v1217
      %1234 = vst.msk [vmem:[%s334 + $0x8] sm:$0xff] %vm361, %v1218
      %1235 = vst.msk [vmem:[%s334 + $0x10] sm:$0xff] %vm361, %v1219
      %1236 = vst.msk [vmem:[%s334 + $0x18] sm:$0xff] %vm361, %v1220
      %1237 = vst.msk [vmem:[%s334 + $0x20] sm:$0xff] %vm361, %v1221
      %1238 = vst.msk [vmem:[%s334 + $0x28] sm:$0xff] %vm361, %v1222
      %1239 = vst.msk [vmem:[%s334 + $0x30] sm:$0xff] %vm361, %v1223
      %1240 = vst.msk [vmem:[%s334 + $0x38] sm:$0xff] %vm361, %v1224
      %1241 = vst.msk [vmem:[%s334 + $0x40] sm:$0xff] %vm361, %v1225
      %1242 = vst.msk [vmem:[%s334 + $0x48] sm:$0xff] %vm361, %v1226
      %1243 = vst.msk [vmem:[%s334 + $0x50] sm:$0xff] %vm361, %v1227
      %1244 = vst.msk [vmem:[%s334 + $0x58] sm:$0xff] %vm361, %v1228
      %1245 = vst.msk [vmem:[%s334 + $0x60] sm:$0xff] %vm361, %v1229
      %1246 = vst.msk [vmem:[%s334 + $0x68] sm:$0xff] %vm361, %v1230
      %1247 = vst.msk [vmem:[%s334 + $0x70] sm:$0xff] %vm361, %v1231
      %1248 = vst.msk [vmem:[%s334 + $0x78] sm:$0xff] %vm361, %v1232
      %s1249 = smul.u32 16, %s20
      %p1250 = scmp.lt.s32.totalorder %s1249, 31
      %s1251 = scalar_select %p1250, %s1249, 31
      %s1252 = smul.addr %s1251, 8
      %s1253 = scalar_lea.vmem %s9, %s1252
      // Predicated region
      $region57: #{tpu_custom_call.1} parent=55 // pred_check
        %p1254 = pneg %p232
      $region58: #{tpu_custom_call.1} parent=55 // pred_check_branch
        %1256 = sbr.rel (%p1254) target = $region60
      $region59: #{tpu_custom_call.1} parent=55 // pred_region
        %s1257 = smul.u32 16, %s20
      $region60: #{tpu_custom_call.1} parent=55 // pred_fallthru
        _
    $region56: #{tpu_custom_call.1} parent=5 // pred_fallthru
      _
    %p1258 = scmp.le.s32.totalorder 2, %s15
    // Predicated region
    $region61: #{tpu_custom_call.1} parent=5 // pred_check
      %p1259 = pneg %p1258
    $region62: #{tpu_custom_call.1} parent=5 // pred_check_branch
      %1261 = sbr.rel (%p1259) target = $region64
    $region63: #{tpu_custom_call.1} parent=5 // pred_region
      %s1262 = ssub.s32 %s15, 2
      // Predicated region
      $region65: #{tpu_custom_call.1} parent=63 // pred_check
        %p1263 = pneg %p238
      $region66: #{tpu_custom_call.1} parent=63 // pred_check_branch
        %1265 = sbr.rel (%p1263) target = $region68
      $region67: #{tpu_custom_call.1} parent=63 // pred_region
        %s1266 = smul.u32 16, %s21
        %p1267 = scmp.lt.s32.totalorder %s1266, 31
        %s1268 = scalar_select %p1267, %s1266, 31
        %s1269 = smul.addr %s1268, 8
        %s1270 = scalar_lea.vmem %s9, %s1269
      $region68: #{tpu_custom_call.1} parent=63 // pred_fallthru
        _
    $region64: #{tpu_custom_call.1} parent=5 // pred_fallthru
      _
  $region6: #{tpu_custom_call.1} parent=0 // loop_footer
    %s19 = sadd.s32 1, %s15
  $region7: #{tpu_custom_call.1} parent=0 // loop_footer_branch
    %14 = sbr.rel target = $region3
  $region8: #{tpu_custom_call.1} parent=0 // loop_exit
    _

</llo_original>
